<compile_context>
chip_gen: v6e
topology: v6e:2x2x1
jax: 0.10.0
libtpu: 0.0.40
codegen_flags: <defaults>
</compile_context>

<pallas_src>
import jax
import jax.numpy as jnp
from jax.experimental import pallas as pl
from jax.experimental.pallas import tpu as pltpu


def _replicate_feats_kernel(feats_ref, out_ref):
    # feats_ref: (TN, C); out_ref: (TN, factor*C)  -- lane-dense output slab.
    feats = feats_ref[...]
    c = feats.shape[1]
    factor = out_ref.shape[1] // c
    # Nearest-neighbor replication: factor contiguous copies of the C channels per row.
    for f in range(factor):                      # factor = 2**DIM (small, static unroll)
        out_ref[:, f * c:(f + 1) * c] = feats


def sparse_subdivide(coords, feats):
    """coords: int32 [N, 1+DIM], feats: [N, C] -> (new_feats [N*2**DIM, C], new_coords)."""
    N, cdim = coords.shape
    DIM = cdim - 1
    C = feats.shape[1]
    factor = 2 ** DIM

    # ---------------- feats: Pallas kernel (store-bandwidth bound replication) -------------
    itemsize = jnp.dtype(feats.dtype).itemsize
    row_bytes = C * itemsize * (1 + factor)            # one input row + one output row
    budget = 24 * 1024 * 1024                          # double-buffered VMEM budget (all gens)
    tn_cap = max(8, min(1024, (budget // (2 * row_bytes)) // 8 * 8))
    n_pad8 = -(-N // 8) * 8                            # round N up to the sublane granule
    TN = min(tn_cap, n_pad8)                           # multiple of 8 by construction
    N_pad = -(-N // TN) * TN                           # pad N to a multiple of TN

    feats_in = feats if N_pad == N else jnp.pad(feats, ((0, N_pad - N), (0, 0)))

    out2d = pl.pallas_call(
        _replicate_feats_kernel,
        out_shape=jax.ShapeDtypeStruct((N_pad, factor * C), feats.dtype),
        grid=(N_pad // TN,),
        in_specs=[pl.BlockSpec((TN, C), lambda i: (i, 0))],
        out_specs=pl.BlockSpec((TN, factor * C), lambda i: (i, 0)),
        compiler_params=pltpu.CompilerParams(
            dimension_semantics=("parallel",),
            vmem_limit_bytes=32 * 1024 * 1024),
    )(feats_in)

    # (N_pad, factor*C) -> slice padding -> (N*factor, C): row-major, free reshape.
    new_feats = out2d[:N].reshape(N * factor, C)

    # ---------------- coords: tiny int32 broadcast-add, left to XLA (perf review) ----------
    # Corner order matches torch.nonzero(torch.ones([2]*DIM)) (row-major enumeration).
    corners = jnp.indices((2,) * DIM).reshape(DIM, -1).T.astype(coords.dtype)   # (factor, DIM)
    offsets = jnp.concatenate(
        [jnp.zeros((factor, 1), coords.dtype), corners], axis=-1)               # (factor, 1+DIM)
    scale = jnp.array([1] + [2] * DIM, dtype=coords.dtype)                      # keep batch col
    new_coords = ((coords * scale)[:, None, :] + offsets[None, :, :]).reshape(N * factor, cdim)

    # TODO(synk): SparseTensor bookkeeping (shape, scale*2, spatial_cache) is metadata only;
    # only coords/feats carry tensor data.
    return new_feats, new_coords


def _reference(coords, feats):
    N, cdim = coords.shape
    DIM = cdim - 1
    factor = 2 ** DIM
    corners = jnp.indices((2,) * DIM).reshape(DIM, -1).T.astype(coords.dtype)
    offsets = jnp.concatenate([jnp.zeros((factor, 1), coords.dtype), corners], axis=-1)
    scaled = coords.at[:, 1:].multiply(2)
    new_coords = (scaled[:, None, :] + offsets[None, :, :]).reshape(N * factor, cdim)
    new_feats = jnp.broadcast_to(feats[:, None, :], (N, factor, feats.shape[1])
                                 ).reshape(N * factor, feats.shape[1])
    return new_feats, new_coords


if __name__ == "__main__":
    key = jax.random.PRNGKey(0)

    # Case 1: small aligned N
    k1, k2, k3 = jax.random.split(key, 3)
    N, DIM, C = 8, 3, 32
    batch_idx = jax.random.randint(k1, (N, 1), 0, 2, dtype=jnp.int32)
    spatial = jax.random.randint(k2, (N, DIM), 0, 16, dtype=jnp.int32)
    coords = jnp.concatenate([batch_idx, spatial], axis=-1)          # [8, 4] int32
    feats = jax.random.normal(k3, (N, C), dtype=jnp.float32)         # [8, 32] float32

    new_feats, new_coords = sparse_subdivide(coords, feats)
    jax.block_until_ready((new_feats, new_coords))

    ref_feats, ref_coords = _reference(coords, feats)
    assert new_coords.shape == (N * 2 ** DIM, DIM + 1)
    assert new_feats.shape == (N * 2 ** DIM, C)
    assert jnp.array_equal(new_coords, ref_coords)
    assert jnp.allclose(new_feats, ref_feats)

    # Case 2: ragged N (exercises wrapper-side pad-to-TN + slice path)
    k4, k5, k6 = jax.random.split(jax.random.PRNGKey(0), 3)
    N2 = 13
    batch_idx2 = jax.random.randint(k4, (N2, 1), 0, 2, dtype=jnp.int32)
    spatial2 = jax.random.randint(k5, (N2, DIM), 0, 16, dtype=jnp.int32)
    coords2 = jnp.concatenate([batch_idx2, spatial2], axis=-1)
    feats2 = jax.random.normal(k6, (N2, C), dtype=jnp.float32)

    nf2, nc2 = sparse_subdivide(coords2, feats2)
    jax.block_until_ready((nf2, nc2))
    rf2, rc2 = _reference(coords2, feats2)
    assert jnp.array_equal(nc2, rc2)
    assert jnp.allclose(nf2, rf2)

    print("KERNEL_OK")
</pallas_src>

<mosaic_0001>
module attributes {stable_mosaic.version = 11 : i64} {
  func.func @_replicate_feats_kernel(%arg0: i32, %arg1: memref<8x32xf32, #tpu.memory_space<vmem>>, %arg2: memref<8x256xf32, #tpu.memory_space<vmem>>) attributes {dimension_semantics = [#tpu.dimension_semantics<parallel>], iteration_bounds = array<i64: 1>, scalar_prefetch = 0 : i64, scratch_operands = 0 : i64, tpu.core_type = #tpu.core_type<tc>, window_params = [{transform_indices = @transform_0, window_bounds = array<i64: 8, 32>}, {transform_indices = @transform_1, window_bounds = array<i64: 8, 256>}]} {
    %c0 = arith.constant 0 : index
    %c0_0 = arith.constant 0 : index
    %0 = vector.load %arg1[%c0, %c0_0] : memref<8x32xf32, #tpu.memory_space<vmem>>, vector<8x32xf32>
    %c0_1 = arith.constant 0 : index
    %c0_2 = arith.constant 0 : index
    %1 = vector.load %arg2[%c0_1, %c0_2] : memref<8x256xf32, #tpu.memory_space<vmem>>, vector<8x32xf32>
    tpu.vector_store %arg2[%c0_1, %c0_2], %0 {strides = array<i32>} : memref<8x256xf32, #tpu.memory_space<vmem>>, vector<8x32xf32>,
    %c0_3 = arith.constant 0 : index
    %c32 = arith.constant 32 : index
    %2 = vector.load %arg2[%c0_3, %c32] : memref<8x256xf32, #tpu.memory_space<vmem>>, vector<8x32xf32>
    tpu.vector_store %arg2[%c0_3, %c32], %0 {strides = array<i32>} : memref<8x256xf32, #tpu.memory_space<vmem>>, vector<8x32xf32>,
    %c0_4 = arith.constant 0 : index
    %c64 = arith.constant 64 : index
    %3 = vector.load %arg2[%c0_4, %c64] : memref<8x256xf32, #tpu.memory_space<vmem>>, vector<8x32xf32>
    tpu.vector_store %arg2[%c0_4, %c64], %0 {strides = array<i32>} : memref<8x256xf32, #tpu.memory_space<vmem>>, vector<8x32xf32>,
    %c0_5 = arith.constant 0 : index
    %c96 = arith.constant 96 : index
    %4 = vector.load %arg2[%c0_5, %c96] : memref<8x256xf32, #tpu.memory_space<vmem>>, vector<8x32xf32>
    tpu.vector_store %arg2[%c0_5, %c96], %0 {strides = array<i32>} : memref<8x256xf32, #tpu.memory_space<vmem>>, vector<8x32xf32>,
    %c0_6 = arith.constant 0 : index
    %c128 = arith.constant 128 : index
    %5 = vector.load %arg2[%c0_6, %c128] : memref<8x256xf32, #tpu.memory_space<vmem>>, vector<8x32xf32>
    tpu.vector_store %arg2[%c0_6, %c128], %0 {strides = array<i32>} : memref<8x256xf32, #tpu.memory_space<vmem>>, vector<8x32xf32>,
    %c0_7 = arith.constant 0 : index
    %c160 = arith.constant 160 : index
    %6 = vector.load %arg2[%c0_7, %c160] : memref<8x256xf32, #tpu.memory_space<vmem>>, vector<8x32xf32>
    tpu.vector_store %arg2[%c0_7, %c160], %0 {strides = array<i32>} : memref<8x256xf32, #tpu.memory_space<vmem>>, vector<8x32xf32>,
    %c0_8 = arith.constant 0 : index
    %c192 = arith.constant 192 : index
    %7 = vector.load %arg2[%c0_8, %c192] : memref<8x256xf32, #tpu.memory_space<vmem>>, vector<8x32xf32>
    tpu.vector_store %arg2[%c0_8, %c192], %0 {strides = array<i32>} : memref<8x256xf32, #tpu.memory_space<vmem>>, vector<8x32xf32>,
    %c0_9 = arith.constant 0 : index
    %c224 = arith.constant 224 : index
    %8 = vector.load %arg2[%c0_9, %c224] : memref<8x256xf32, #tpu.memory_space<vmem>>, vector<8x32xf32>
    tpu.vector_store %arg2[%c0_9, %c224], %0 {strides = array<i32>} : memref<8x256xf32, #tpu.memory_space<vmem>>, vector<8x32xf32>,
    return
  }
  func.func @transform_0(%arg0: i32) -> (i32, i32) {
    %c0_i32 = arith.constant 0 : i32
    %c0_i32_0 = arith.constant 0 : i32
    return %arg0, %c0_i32 : i32, i32
  }
  func.func @transform_1(%arg0: i32) -> (i32, i32) {
    %c0_i32 = arith.constant 0 : i32
    %c0_i32_0 = arith.constant 0 : i32
    return %arg0, %c0_i32 : i32, i32
  }
}

</mosaic_0001>

<llo_original>
// kernel: tpu_custom_call.1
$region0: #{tpu_custom_call.1}
  #allocation0 [shape = 'u32[]', space=smem, size = 0x4, offset = 0x4, fixed_abs, tag = 'smem constant byte address 0x4 - core index']
  #allocation1 [shape = 'u32[144,128]{1,0:T(1,128)}', space=vmem, size = 0x12000, scoped, tag = 'internal scratch']
  %s0 = inlined_call_operand.hbm [shape: f32[8,32], index: 0, kind: input, shape index: {}]
  %s1 = inlined_call_operand.hbm [shape: f32[8,256], index: 1, kind: output, shape index: {}]
  %s2 = sld [smem:[#allocation0]]
  $region18: #{tpu_custom_call.1} parent=0
    _
  %s4 = ssub.s32 1, %s2
  %s5 = scalar_select 0, %s4, %s2
  $region1: #{tpu_custom_call.1} parent=0
    #allocation2 [shape = 'u8[4096]{0}', space=vmem, size = 0x1000, scoped, tag = 'input window, operand 0, single buffered']
    #allocation3 [shape = 's32[1]{0}', space=sflag, size = 0x4, scoped, tag = 'scoped memory for tpu_custom_call.1']
    #allocation4 [shape = 's32[1]{0}', space=sflag, size = 0x4, scoped, tag = 'scoped memory for tpu_custom_call.1']
    #allocation5 [shape = 'u8[8192]{0}', space=vmem, size = 0x2000, scoped, tag = 'output window, operand 0, single buffered']
    %6 = vsyncpa [#allocation3], 0
    %7 = vsyncpa [#allocation4], 0
    // Predicated region
    $region2: #{tpu_custom_call.1} parent=1 // pred_check
      _
    $region3: #{tpu_custom_call.1} parent=1 // pred_check_branch
      %9 = sbr.rel (0) target = $region5
    $region4: #{tpu_custom_call.1} parent=1 // pred_region
      %s11 = ssub.s32 128, 128
      %12 = vsyncadd [#allocation3], %s11
      %s14 = sshll.u32 [#allocation2], 4
      %s15 = int_to_ptr.vmem [resolvable:$true] %s14
      %17 = dma.hbm_to_vmem [thread:$0]  %s0, 128, %s15, [#allocation3]
    $region5: #{tpu_custom_call.1} parent=1 // pred_fallthru
      _
    // Predicated region
    $region6: #{tpu_custom_call.1} parent=1 // pred_check
      _
    $region7: #{tpu_custom_call.1} parent=1 // pred_check_branch
      %19 = sbr.rel (0) target = $region9
    $region8: #{tpu_custom_call.1} parent=1 // pred_region
      %20 = dma.done [#allocation3], 128
    $region9: #{tpu_custom_call.1} parent=1 // pred_fallthru
      _
    %v21 = vld [vmem:[#allocation2] sm:$0xff]
    %vm22 = vcmask 261120
    %23 = vst.msk [vmem:[#allocation5] sm:$0xff] %vm22, %v21
    %25 = vrot.lane.b32.xlu0 %v21, 32
    %v26 = vpop.permute.xlu0 %25
    %vm28 = vcmask 523520
    %29 = vst.msk [vmem:[#allocation5] sm:$0xff] %vm28, %v26
    %30 = vrot.lane.b32.xlu0 %v21, 64
    %v31 = vpop.permute.xlu0 %30
    %vm33 = vcmask 785920
    %34 = vst.msk [vmem:[#allocation5] sm:$0xff] %vm33, %v31
    %35 = vrot.lane.b32.xlu0 %v21, 96
    %v36 = vpop.permute.xlu0 %35
    %vm38 = vcmask 1048320
    %39 = vst.msk [vmem:[#allocation5] sm:$0xff] %vm38, %v36
    %40 = vst.msk [vmem:[#allocation5 + $0x8] sm:$0xff] %vm22, %v21
    %41 = vst.msk [vmem:[#allocation5 + $0x8] sm:$0xff] %vm28, %v26
    %42 = vst.msk [vmem:[#allocation5 + $0x8] sm:$0xff] %vm33, %v31
    %43 = vst.msk [vmem:[#allocation5 + $0x8] sm:$0xff] %vm38, %v36
    // Predicated region
    $region10: #{tpu_custom_call.1} parent=1 // pred_check
      _
    $region11: #{tpu_custom_call.1} parent=1 // pred_check_branch
      %45 = sbr.rel (0) target = $region13
    $region12: #{tpu_custom_call.1} parent=1 // pred_region
      %s47 = ssub.s32 256, 256
      %48 = vsyncadd [#allocation4], %s47
      %s50 = sshll.u32 [#allocation5], 4
      %s51 = int_to_ptr.vmem [resolvable:$true] %s50
      %53 = dma.vmem_to_hbm [thread:$0]  %s51, 256, %s1, [#allocation4]
    $region13: #{tpu_custom_call.1} parent=1 // pred_fallthru
      _
    // Predicated region
    $region14: #{tpu_custom_call.1} parent=1 // pred_check
      _
    $region15: #{tpu_custom_call.1} parent=1 // pred_check_branch
      %55 = sbr.rel (0) target = $region17
    $region16: #{tpu_custom_call.1} parent=1 // pred_region
      %56 = dma.done [#allocation4], 256
    $region17: #{tpu_custom_call.1} parent=1 // pred_fallthru
      _
    %57 = vsyncpa [#allocation3], 1
    %58 = vsyncpa [#allocation4], 1

</llo_original>
